<compile_context>
chip_gen: v7x
topology: tpu7x:2x2x1
jax: 0.10.0
libtpu: 0.0.40
codegen_flags: <defaults>
</compile_context>

<pallas_src>
import collections
import functools

import jax
import jax.numpy as jnp
from jax import lax
from jax.experimental import pallas as pl
from jax.experimental.pallas import tpu as pltpu


# ------------------------------ hardware config ------------------------------

_HwCfg = collections.namedtuple("_HwCfg", "vmem_limit tile_budget tk_cap ncores")


@functools.lru_cache(maxsize=None)
def _hw_config():
    """Generation-aware VMEM limit / streamed-tile budget / K-tile cap / #TCs."""
    vmem_cap = None
    try:
        vmem_cap = int(pltpu.get_tpu_info().vmem_capacity_bytes)
    except Exception:
        vmem_cap = None
    kind = ""
    try:
        kind = jax.devices()[0].device_kind.lower()
    except Exception:
        pass
    is_v7 = ("v7" in kind) or ("tpu7" in kind)
    ncores = 2 if is_v7 else 1                       # v7x: 2 TensorCores / chip
    if vmem_cap is None:
        # Unknown hardware: conservative numbers that work everywhere.
        return _HwCfg(32 << 20, 8 << 20, 4096, ncores)
    if vmem_cap >= (100 << 20):                      # v5e / v6e: 128 MiB VMEM
        return _HwCfg(96 << 20, 32 << 20, 16384, ncores)
    # v7x-class: 64 MiB per TensorCore -- keep buffers tight.
    return _HwCfg(min(40 << 20, int(vmem_cap * 0.6)), 10 << 20, 8192, ncores)


# ------------------------------ shape helpers --------------------------------

def _round_up(x, m):
    return ((x + m - 1) // m) * m


def _sublane(itemsize):
    return {4: 8, 2: 16, 1: 32}.get(int(itemsize), 8)


def _as_chw(feature):
    """(1,C,H,W) or (C,H,W) -> (C,H,W).

    Unlike torch's .squeeze(), this never silently drops C/H/W dims that happen
    to be 1, and it fails loudly if batch != 1.
    """
    if feature.ndim == 4:
        if feature.shape[0] != 1:
            raise ValueError(
                f"gram_matrix requires batch size 1, got shape {feature.shape}")
        feature = feature[0]
    if feature.ndim != 3:
        raise ValueError(
            f"expected (1, C, H, W) or (C, H, W), got shape {feature.shape}")
    return feature


def _tiling(c, hw, itemsize, max_tk, cfg):
    """Pick the K tile.  Returns (tk, n_k, rem) with rem = ragged last-tile width."""
    rows = _round_up(c, _sublane(itemsize))
    # Resident VMEM blocks (gram output / target / accumulator) come out of the
    # streamed-tile budget (important on v7x's 64 MiB).
    resident = 3 * _round_up(c, 8) * _round_up(c, 128) * 4
    budget = max(cfg.tile_budget - resident, 3 * rows * 128 * itemsize)
    cap = (budget // (3 * rows * itemsize)) // 128 * 128    # up to 3 buffers
    cap = min(max(cap, 128), cfg.tk_cap)
    if max_tk is not None:
        cap = min(cap, max(128, (int(max_tk) // 128) * 128))
    if hw <= cap:
        return hw, 1, 0            # single full-width block (no masking needed)
    n_k = -(-hw // cap)
    return cap, n_k, hw % cap


_Plan = collections.namedtuple(
    "_Plan", "x2 c hw tk n_k rem kpc ncores nbuf vmem_limit")


def _prepare(feature, *, stream_dtype=None, max_tk=None, num_cores=None):
    """Reshape (no pad, no HBM copy) and derive the streaming plan."""
    chw = _as_chw(feature)
    c, h, w = (int(s) for s in chw.shape)
    hw = h * w
    x2 = chw.reshape(c, hw)                       # contiguous reshape: free
    if stream_dtype is not None and x2.dtype != jnp.dtype(stream_dtype):
        x2 = x2.astype(stream_dtype)              # e.g. bf16 streaming
    cfg = _hw_config()
    ncores = int(num_cores) if num_cores else cfg.ncores
    tk, n_k, rem = _tiling(c, hw, x2.dtype.itemsize, max_tk, cfg)
    kpc = -(-n_k // ncores)                       # K tiles per core
    nbuf = 3 if (c <= 128 and kpc >= 3) else 2    # deeper pipeline for small C
    return _Plan(x2, c, hw, tk, n_k, rem, kpc, ncores, nbuf, cfg.vmem_limit)


def _stream_spec(block_shape, index_map, nbuf):
    """BlockSpec for the streamed activation, optionally with 3-deep buffering."""
    if nbuf != 2:
        try:
            return pl.BlockSpec(block_shape, index_map,
                                pipeline_mode=pl.Buffered(nbuf))
        except Exception:          # older jax without pipeline_mode / Buffered
            pass
    return pl.BlockSpec(block_shape, index_map)


# ------------------------------ Pallas kernels --------------------------------

def _gram_kernel(x_ref, g_ref, *, n_k, kpc, rem, inv_hw, total_tiles):
    """Per-core partial gram: accumulates x @ x^T directly into the resident
    output block over the (arbitrary) K axis; scales by 1/HW on the last step."""
    k = pl.program_id(1)
    t = pl.program_id(0) * kpc + k                    # global K-tile index

    @pl.when(k == 0)
    def _():
        g_ref[...] = jnp.zeros_like(g_ref)

    x = x_ref[...]

    def _acc(v):
        g_ref[...] += lax.dot_general(
            v, v, dimension_numbers=(((1,), (1,)), ((), ())),   # contract last dim
            preferred_element_type=jnp.float32)

    if rem:
        # Only the last (ragged) K tile pays for the column mask.
        @pl.when(t < n_k - 1)
        def _():
            _acc(x)

        @pl.when(t == n_k - 1)
        def _():
            col = lax.broadcasted_iota(jnp.int32, x.shape, 1)
            _acc(jnp.where(col < rem, x, jnp.zeros_like(x)))
    elif total_tiles != n_k:
        # Even tiles, but the core split has overflow steps -> skip them.
        @pl.when(t < n_k)
        def _():
            _acc(x)
    else:
        _acc(x)                                       # pure MXU path

    @pl.when(k == kpc - 1)
    def _():
        g_ref[...] *= jnp.float32(inv_hw)


def _style_loss_kernel(x_ref, tgt_ref, o_ref, acc_ref, *, n_k, rem, inv_hw, scale):
    """Fused single-core path: gram accumulation + MSE finalize into SMEM."""
    k = pl.program_id(0)

    @pl.when(k == 0)
    def _():
        acc_ref[...] = jnp.zeros_like(acc_ref)

    x = x_ref[...]

    def _acc(v):
        acc_ref[...] += lax.dot_general(
            v, v, dimension_numbers=(((1,), (1,)), ((), ())),
            preferred_element_type=jnp.float32)

    if rem:
        @pl.when(k < n_k - 1)
        def _():
            _acc(x)

        @pl.when(k == n_k - 1)
        def _():
            col = lax.broadcasted_iota(jnp.int32, x.shape, 1)
            _acc(jnp.where(col < rem, x, jnp.zeros_like(x)))
    else:
        _acc(x)

    @pl.when(k == n_k - 1)
    def _():
        g = acc_ref[...] * jnp.float32(inv_hw)
        d = g - tgt_ref[...]
        o_ref[0] = jnp.sum(d * d) * jnp.float32(scale)      # == F.mse_loss


def _loss_finalize_kernel(gp_ref, tgt_ref, o_ref, *, ncores, scale):
    """Tiny epilogue for the multi-core path: sum partial grams, MSE to SMEM."""
    g = gp_ref[0]
    for i in range(1, ncores):
        g = g + gp_ref[i]
    d = g - tgt_ref[...]
    o_ref[0] = jnp.sum(d * d) * jnp.float32(scale)


# -------------------------------- wrappers ------------------------------------

def _gram_partials_call(plan):
    """Runs the gram kernel; returns per-core partial grams (ncores, C, C) f32."""
    x2, c, hw, kpc, n_k = plan.x2, plan.c, plan.hw, plan.kpc, plan.n_k
    kernel = functools.partial(
        _gram_kernel, n_k=n_k, kpc=kpc, rem=plan.rem,
        inv_hw=1.0 / float(hw), total_tiles=plan.ncores * kpc)

    def x_map(ci, ki):
        # Clamp overflow steps of the last core to the last real tile; the
        # kernel skips their accumulation, so the duplicate read is harmless.
        return (0, jnp.minimum(ci * kpc + ki, n_k - 1))

    return pl.pallas_call(
        kernel,
        out_shape=jax.ShapeDtypeStruct((plan.ncores, c, c), jnp.float32),
        grid=(plan.ncores, kpc),
        in_specs=[_stream_spec((c, plan.tk), x_map, plan.nbuf)],
        out_specs=pl.BlockSpec((None, c, c), lambda ci, ki: (ci, 0, 0)),
        compiler_params=pltpu.CompilerParams(
            dimension_semantics=("parallel", "arbitrary"),
            vmem_limit_bytes=plan.vmem_limit),
        cost_estimate=pl.CostEstimate(
            flops=2 * c * c * hw, transcendentals=0,
            bytes_accessed=c * hw * x2.dtype.itemsize + plan.ncores * c * c * 4),
    )(x2)


def gram_matrix_pallas(feature, *, stream_dtype=None, max_tk=None, num_cores=None):
    """Equivalent of the PyTorch gram_matrix: (C, C) f32, scaled by 1/(H*W)."""
    plan = _prepare(feature, stream_dtype=stream_dtype, max_tk=max_tk,
                    num_cores=num_cores)
    partials = _gram_partials_call(plan)
    return partials[0] if plan.ncores == 1 else jnp.sum(partials, axis=0)


def _style_loss_forward(inp, target, *, stream_dtype=None, max_tk=None,
                        num_cores=None):
    """Returns F.mse_loss(gram(inp), target) as an f32 scalar."""
    plan = _prepare(inp, stream_dtype=stream_dtype, max_tk=max_tk,
                    num_cores=num_cores)
    c, hw = plan.c, plan.hw
    if tuple(target.shape) != (c, c):
        raise ValueError(
            f"StyleLoss: input has {c} channels but the stored target gram is "
            f"{tuple(target.shape)}; the target feature must have matching channels.")
    mse_scale = 1.0 / float(c * c)

    if plan.ncores == 1:
        # Fused: streamed K reduction + resident target + SMEM scalar output.
        kernel = functools.partial(
            _style_loss_kernel, n_k=plan.n_k, rem=plan.rem,
            inv_hw=1.0 / float(hw), scale=mse_scale)
        out = pl.pallas_call(
            kernel,
            out_shape=jax.ShapeDtypeStruct((1,), jnp.float32),
            grid=(plan.n_k,),
            in_specs=[
                _stream_spec((c, plan.tk), lambda k: (0, k), plan.nbuf),
                pl.BlockSpec((c, c), lambda k: (0, 0)),        # resident target
            ],
            out_specs=pl.BlockSpec(memory_space=pltpu.MemorySpace.SMEM),
            scratch_shapes=[pltpu.VMEM((c, c), jnp.float32)],
            compiler_params=pltpu.CompilerParams(
                dimension_semantics=("arbitrary",),
                vmem_limit_bytes=plan.vmem_limit),
            cost_estimate=pl.CostEstimate(
                flops=2 * c * c * hw + 3 * c * c, transcendentals=0,
                bytes_accessed=c * hw * plan.x2.dtype.itemsize + 2 * c * c * 4 + 4),
        )(plan.x2, target)
        return out[0]

    # Multi-TensorCore (v7x) path: per-core partial grams + tiny finalize kernel.
    partials = _gram_partials_call(plan)
    out = pl.pallas_call(
        functools.partial(_loss_finalize_kernel, ncores=plan.ncores,
                          scale=mse_scale),
        out_shape=jax.ShapeDtypeStruct((1,), jnp.float32),
        in_specs=[pl.BlockSpec(memory_space=pltpu.MemorySpace.VMEM),
                  pl.BlockSpec(memory_space=pltpu.MemorySpace.VMEM)],
        out_specs=pl.BlockSpec(memory_space=pltpu.MemorySpace.SMEM),
        compiler_params=pltpu.CompilerParams(vmem_limit_bytes=plan.vmem_limit),
    )(partials, target)
    return out[0]


class StyleLossPallas:
    """JAX/Pallas equivalent of the PyTorch StyleLoss module (forward only)."""
    # TODO(synk): backward/grad pass is not implemented (forward only, per spec).

    def __init__(self, target_feature, *, stream_dtype=None, max_tk=None,
                 num_cores=None):
        tgt = gram_matrix_pallas(target_feature, stream_dtype=stream_dtype,
                                 max_tk=max_tk, num_cores=num_cores)
        self.target = lax.stop_gradient(tgt)          # like .detach(): (C, C) f32
        self._c = int(self.target.shape[0])
        self._forward = jax.jit(functools.partial(
            _style_loss_forward, stream_dtype=stream_dtype,
            max_tk=max_tk, num_cores=num_cores))
        self.loss = None

    def __call__(self, inp):
        c = inp.shape[1] if inp.ndim == 4 else inp.shape[0]
        if int(c) != self._c:
            raise ValueError(
                f"StyleLoss: input has {int(c)} channels but the target gram was "
                f"built for {self._c} channels.")
        self.loss = self._forward(inp, self.target)   # == F.mse_loss(G, target)
        return self.loss / 4.0                        # matches torch forward()


# --------------------------------- reference -----------------------------------

def _ref_gram(f):
    x = f[0] if f.ndim == 4 else f
    c = x.shape[0]
    x = x.reshape(c, -1).astype(jnp.float32)
    return (x @ x.T) / x.shape[1]


def _ref_mse(inp, tgt_feat):
    g = _ref_gram(inp)
    t = _ref_gram(tgt_feat)
    return jnp.mean((g - t) ** 2)


# ----------------------------------- main ---------------------------------------

if __name__ == "__main__":
    key = jax.random.PRNGKey(0)
    k1, k2, k3, k4, k5, k6 = jax.random.split(key, 6)

    # Case A: canonical small NCHW feature (batch=1, C=4, 16x16), exact f32 path.
    tgt_a = jax.random.normal(k1, (1, 4, 16, 16), jnp.float32)
    inp_a = jax.random.normal(k2, (1, 4, 16, 16), jnp.float32)
    sl_a = StyleLossPallas(tgt_a)
    out_a = jax.block_until_ready(sl_a(inp_a))
    ref_mse_a = _ref_mse(inp_a, tgt_a)
    assert jnp.allclose(out_a, ref_mse_a / 4.0, rtol=1e-4, atol=1e-6), (out_a, ref_mse_a / 4.0)
    assert jnp.allclose(sl_a.loss, ref_mse_a, rtol=1e-4, atol=1e-6), (sl_a.loss, ref_mse_a)

    # Standalone gram check (matches the torch gram_matrix helper).
    g_pal = jax.block_until_ready(gram_matrix_pallas(inp_a))
    assert jnp.allclose(g_pal, _ref_gram(inp_a), rtol=1e-4, atol=1e-5)

    # Case B: ragged C (7, not a multiple of 8) and ragged H*W (144) -- no padding.
    tgt_b = jax.random.normal(k3, (1, 7, 12, 12), jnp.float32)
    inp_b = jax.random.normal(k4, (1, 7, 12, 12), jnp.float32)
    sl_b = StyleLossPallas(tgt_b)
    out_b = jax.block_until_ready(sl_b(inp_b))
    assert jnp.allclose(out_b, _ref_mse(inp_b, tgt_b) / 4.0, rtol=1e-4, atol=1e-6)

    # Case C: multi-tile K streaming with a ragged last tile (H*W=300, tk=128),
    # plus the dual-TensorCore (v7x-style) split forced on this chip.
    tgt_c = jax.random.normal(k5, (1, 8, 15, 20), jnp.float32)
    inp_c = jax.random.normal(k6, (1, 8, 15, 20), jnp.float32)
    ref_c = _ref_mse(inp_c, tgt_c) / 4.0
    sl_c = StyleLossPallas(tgt_c, max_tk=128)
    out_c = jax.block_until_ready(sl_c(inp_c))
    assert jnp.allclose(out_c, ref_c, rtol=1e-4, atol=1e-6), (out_c, ref_c)
    sl_c2 = StyleLossPallas(tgt_c, max_tk=128, num_cores=2)
    out_c2 = jax.block_until_ready(sl_c2(inp_c))
    assert jnp.allclose(out_c2, ref_c, rtol=1e-4, atol=1e-6), (out_c2, ref_c)

    # Case D: bf16 streaming of f32 features (bandwidth optimization) -- small,
    # expected precision change, so looser tolerance.
    sl_d = StyleLossPallas(tgt_a, stream_dtype=jnp.bfloat16)
    out_d = jax.block_until_ready(sl_d(inp_a))
    assert jnp.allclose(out_d, ref_mse_a / 4.0, rtol=0.15, atol=1e-4), (out_d, ref_mse_a / 4.0)

    print("KERNEL_OK")
</pallas_src>

<mosaic_0001>
module attributes {stable_mosaic.version = 11 : i64} {
  func.func @_gram_kernel(%arg0: i32, %arg1: i32, %arg2: memref<4x256xf32, #tpu.memory_space<vmem>>, %arg3: memref<1x4x4xf32, #tpu.memory_space<vmem>>) attributes {dimension_semantics = [#tpu.dimension_semantics<parallel>, #tpu.dimension_semantics<arbitrary>], iteration_bounds = array<i64: 1, 1>, scalar_prefetch = 0 : i64, scratch_operands = 0 : i64, tpu.core_type = #tpu.core_type<tc>, window_params = [{transform_indices = @transform_0, window_bounds = array<i64: 4, 256>}, {transform_indices = @transform_1, window_bounds = array<i64: 1, 4, 4>}]} {
    %c0_i32 = arith.constant 0 : i32
    %0 = arith.cmpi eq, %arg1, %c0_i32 : i32
    %1 = arith.extui %0 : i1 to i32
    %c0_i32_0 = arith.constant 0 : i32
    %2 = arith.cmpi ne, %1, %c0_i32_0 : i32
    scf.if %2 {
      %cst_10 = arith.constant 0.000000e+00 : f32
      %14 = vector.broadcast %cst_10 : f32 to vector<4x4xf32>
      %c0_11 = arith.constant 0 : index
      %c0_12 = arith.constant 0 : index
      %c0_13 = arith.constant 0 : index
      %15 = vector.load %arg3[%c0_11, %c0_12, %c0_13] : memref<1x4x4xf32, #tpu.memory_space<vmem>>, vector<1x4x4xf32>
      %16 = vector.shape_cast %15 : vector<1x4x4xf32> to vector<4x4xf32>
      %17 = vector.shape_cast %14 : vector<4x4xf32> to vector<1x4x4xf32>
      tpu.vector_store %arg3[%c0_11, %c0_12, %c0_13], %17 {strides = array<i32>} : memref<1x4x4xf32, #tpu.memory_space<vmem>>, vector<1x4x4xf32>,
    } else {
    }
    %c0 = arith.constant 0 : index
    %c0_1 = arith.constant 0 : index
    %3 = vector.load %arg2[%c0, %c0_1] : memref<4x256xf32, #tpu.memory_space<vmem>>, vector<4x256xf32>
    %c0_2 = arith.constant 0 : index
    %c0_3 = arith.constant 0 : index
    %c0_4 = arith.constant 0 : index
    %4 = vector.load %arg3[%c0_2, %c0_3, %c0_4] : memref<1x4x4xf32, #tpu.memory_space<vmem>>, vector<1x4x4xf32>
    %5 = vector.shape_cast %4 : vector<1x4x4xf32> to vector<4x4xf32>
    %cst = arith.constant dense<0.000000e+00> : vector<4x4xf32>
    %6 = tpu.matmul %3, %3, %cst {dimension_numbers = #tpu.dot_dimension_numbers<[1], [1], [0], [0], [0, 0, 1, 0], [], []>} : vector<4x256xf32>, vector<4x256xf32>, vector<4x4xf32> -> vector<4x4xf32>
    %7 = arith.addf %5, %6 : vector<4x4xf32>
    %c0_5 = arith.constant 0 : index
    %c0_6 = arith.constant 0 : index
    %c0_7 = arith.constant 0 : index
    %8 = vector.load %arg3[%c0_5, %c0_6, %c0_7] : memref<1x4x4xf32, #tpu.memory_space<vmem>>, vector<1x4x4xf32>
    %9 = vector.shape_cast %8 : vector<1x4x4xf32> to vector<4x4xf32>
    %10 = vector.shape_cast %7 : vector<4x4xf32> to vector<1x4x4xf32>
    tpu.vector_store %arg3[%c0_5, %c0_6, %c0_7], %10 {strides = array<i32>} : memref<1x4x4xf32, #tpu.memory_space<vmem>>, vector<1x4x4xf32>,
    %c0_i32_8 = arith.constant 0 : i32
    %11 = arith.cmpi eq, %arg1, %c0_i32_8 : i32
    %12 = arith.extui %11 : i1 to i32
    %c0_i32_9 = arith.constant 0 : i32
    %13 = arith.cmpi ne, %12, %c0_i32_9 : i32
    scf.if %13 {
      %c0_10 = arith.constant 0 : index
      %c0_11 = arith.constant 0 : index
      %c0_12 = arith.constant 0 : index
      %14 = vector.load %arg3[%c0_10, %c0_11, %c0_12] : memref<1x4x4xf32, #tpu.memory_space<vmem>>, vector<1x4x4xf32>
      %15 = vector.shape_cast %14 : vector<1x4x4xf32> to vector<4x4xf32>
      %cst_13 = arith.constant 3.906250e-03 : f32
      %16 = vector.broadcast %cst_13 : f32 to vector<4x4xf32>
      %17 = arith.mulf %15, %16 : vector<4x4xf32>
      %c0_14 = arith.constant 0 : index
      %c0_15 = arith.constant 0 : index
      %c0_16 = arith.constant 0 : index
      %18 = vector.load %arg3[%c0_14, %c0_15, %c0_16] : memref<1x4x4xf32, #tpu.memory_space<vmem>>, vector<1x4x4xf32>
      %19 = vector.shape_cast %18 : vector<1x4x4xf32> to vector<4x4xf32>
      %20 = vector.shape_cast %17 : vector<4x4xf32> to vector<1x4x4xf32>
      tpu.vector_store %arg3[%c0_14, %c0_15, %c0_16], %20 {strides = array<i32>} : memref<1x4x4xf32, #tpu.memory_space<vmem>>, vector<1x4x4xf32>,
    } else {
    }
    return
  }
  func.func @transform_0(%arg0: i32, %arg1: i32) -> (i32, i32) {
    %c1_i32 = arith.constant 1 : i32
    %0 = arith.muli %arg0, %c1_i32 : i32
    %1 = arith.addi %0, %arg1 : i32
    %c0_i32 = arith.constant 0 : i32
    %2 = arith.minsi %1, %c0_i32 : i32
    %c0_i32_0 = arith.constant 0 : i32
    %c0_i32_1 = arith.constant 0 : i32
    return %c0_i32_0, %2 : i32, i32
  }
  func.func @transform_1(%arg0: i32, %arg1: i32) -> (i32, i32, i32) {
    %c0_i32 = arith.constant 0 : i32
    %c0_i32_0 = arith.constant 0 : i32
    %c0_i32_1 = arith.constant 0 : i32
    return %arg0, %c0_i32, %c0_i32_0 : i32, i32, i32
  }
}

</mosaic_0001>

<llo_original>
// kernel: tpu_custom_call.1
$region0: #{tpu_custom_call.1}
  #allocation0 [shape = 'u32[]', space=smem, size = 0x4, offset = 0x4, fixed_abs, tag = 'smem constant byte address 0x4 - core index']
  #allocation1 [shape = 'u32[144,128]{1,0:T(1,128)}', space=vmem, size = 0x12000, scoped, tag = 'internal scratch']
  %s0 = inlined_call_operand.hbm [shape: f32[4,256], index: 0, kind: input, shape index: {}]
  %s1 = inlined_call_operand.hbm [shape: f32[1,4,4], index: 1, kind: output, shape index: {}]
  %s2 = sld [smem:[#allocation0]]
  $region26: #{tpu_custom_call.1} parent=0
    _
  %s4 = ssub.s32 1, %s2
  %s5 = scalar_select 0, %s4, %s2
  $region1: #{tpu_custom_call.1} parent=0
    #allocation2 [shape = 'u8[4096]{0}', space=vmem, size = 0x1000, scoped, tag = 'input window, operand 0, single buffered']
    #allocation3 [shape = 's32[1]{0}', space=sflag, size = 0x4, scoped, tag = 'scoped memory for tpu_custom_call.1']
    #allocation4 [shape = 's32[1]{0}', space=sflag, size = 0x4, scoped, tag = 'scoped memory for tpu_custom_call.1']
    #allocation5 [shape = 'u8[2048]{0}', space=vmem, size = 0x800, scoped, tag = 'output window, operand 0, single buffered']
    %6 = vsyncpa [#allocation3], 0
    %7 = vsyncpa [#allocation4], 0
    // Predicated region
    $region2: #{tpu_custom_call.1} parent=1 // pred_check
      _
    $region3: #{tpu_custom_call.1} parent=1 // pred_check_branch
      %9 = sbr.rel (0) target = $region5
    $region4: #{tpu_custom_call.1} parent=1 // pred_region
      %s10 = sadd.s32 0, 0
      %p11 = scmp.lt.s32.totalorder %s10, 0
      %s12 = scalar_select %p11, %s10, 0
      %s13 = smul.u32 2, %s12
      %s15 = ssub.s32 128, 128
      %16 = vsyncadd [#allocation3], %s15
      %s17 = smul.addr %s13, 64
      %s18 = scalar_lea.hbm %s0, %s17
      %s20 = sshll.u32 [#allocation2], 4
      %s21 = int_to_ptr.vmem [resolvable:$true] %s20
      %23 = dma.hbm_to_vmem [thread:$0]  %s18, 128, %s21, [#allocation3]
    $region5: #{tpu_custom_call.1} parent=1 // pred_fallthru
      _
    // Predicated region
    $region6: #{tpu_custom_call.1} parent=1 // pred_check
      _
    $region7: #{tpu_custom_call.1} parent=1 // pred_check_branch
      %25 = sbr.rel (0) target = $region9
    $region8: #{tpu_custom_call.1} parent=1 // pred_region
      %26 = dma.done [#allocation3], 128
    $region9: #{tpu_custom_call.1} parent=1 // pred_fallthru
      _
    %s27 = sadd.s32 0, 0
    %p28 = scmp.lt.s32.totalorder %s27, 0
    %s29 = scalar_select %p28, %s27, 0
    %s30 = smul.u32 2, %s29
    %p31 = scmp.eq.s32.totalorder 0, 0
    // Predicated region
    $region10: #{tpu_custom_call.1} parent=1 // pred_check
      %p32 = pneg %p31
    $region11: #{tpu_custom_call.1} parent=1 // pred_check_branch
      %34 = sbr.rel (%p32) target = $region13
    $region12: #{tpu_custom_call.1} parent=1 // pred_region
      %vm35 = vcmask 27648
      %36 = vst.msk [vmem:[#allocation5] sm:$0xf] %vm35, 0.0
    $region13: #{tpu_custom_call.1} parent=1 // pred_fallthru
      _
    %v37 = vld [vmem:[#allocation2] sm:$0xff]
    %v38 = vld [vmem:[#allocation5] sm:$0xf]
    %v40 = vcombine.high %v37, %v37
    %42 = vmatprep.subr.mxu0 %v40
    %43 = vmatpush1.xpose.msra.mxu0 %v37
    %44 = vmatprep.subr.mxu0 0.0
    %45 = vmatpush1.xpose.msra.mxu0 0.0
    %46 = vmatprep.subr.mxu0 0.0
    %47 = vmatpush1.xpose.msra.mxu0 0.0
    %48 = vmatprep.subr.mxu0 0.0
    %49 = vmatpush1.xpose.msra.mxu0 0.0
    %50 = vmatprep.subr.mxu0 0.0
    %51 = vmatpush1.xpose.msra.mxu0 0.0
    %52 = vmatprep.subr.mxu0 0.0
    %53 = vmatpush1.xpose.msra.mxu0 0.0
    %54 = vmatprep.subr.mxu0 0.0
    %55 = vmatpush1.xpose.msra.mxu0 0.0
    %56 = vmatprep.subr.mxu0 0.0
    %57 = vmatpush1.xpose.msra.mxu0 0.0
    %58 = vmatprep.subr.mxu0 0.0
    %59 = vmatpush1.xpose.msra.mxu0 0.0
    %60 = vmatprep.subr.mxu0 0.0
    %61 = vmatpush1.xpose.msra.mxu0 0.0
    %62 = vmatprep.subr.mxu0 0.0
    %63 = vmatpush1.xpose.msra.mxu0 0.0
    %64 = vmatprep.subr.mxu0 0.0
    %65 = vmatpush1.xpose.msra.mxu0 0.0
    %66 = vmatprep.subr.mxu0 0.0
    %67 = vmatpush1.xpose.msra.mxu0 0.0
    %68 = vmatprep.subr.mxu0 0.0
    %69 = vmatpush1.xpose.msra.mxu0 0.0
    %70 = vmatprep.subr.mxu0 0.0
    %71 = vmatpush1.xpose.msra.mxu0 0.0
    %72 = vmatprep.subr.mxu0 0.0
    %73 = vmatpush1.xpose.msra.mxu0 0.0
    %74 = vmatprep.subr.mxu0 0.0
    %75 = vmatpush1.xpose.msra.mxu0 0.0
    %76 = vmatprep.subr.mxu0 0.0
    %77 = vmatpush1.xpose.msra.mxu0 0.0
    %78 = vmatprep.subr.mxu0 0.0
    %79 = vmatpush1.xpose.msra.mxu0 0.0
    %80 = vmatprep.subr.mxu0 0.0
    %81 = vmatpush1.xpose.msra.mxu0 0.0
    %82 = vmatprep.subr.mxu0 0.0
    %83 = vmatpush1.xpose.msra.mxu0 0.0
    %84 = vmatprep.subr.mxu0 0.0
    %85 = vmatpush1.xpose.msra.mxu0 0.0
    %86 = vmatprep.subr.mxu0 0.0
    %87 = vmatpush1.xpose.msra.mxu0 0.0
    %88 = vmatprep.subr.mxu0 0.0
    %89 = vmatpush1.xpose.msra.mxu0 0.0
    %90 = vmatprep.subr.mxu0 0.0
    %91 = vmatpush1.xpose.msra.mxu0 0.0
    %92 = vmatprep.subr.mxu0 0.0
    %93 = vmatpush1.xpose.msra.mxu0 0.0
    %94 = vmatprep.subr.mxu0 0.0
    %95 = vmatpush1.xpose.msra.mxu0 0.0
    %96 = vmatprep.subr.mxu0 0.0
    %97 = vmatpush1.xpose.msra.mxu0 0.0
    %98 = vmatprep.subr.mxu0 0.0
    %99 = vmatpush1.xpose.msra.mxu0 0.0
    %100 = vmatprep.subr.mxu0 0.0
    %101 = vmatpush1.xpose.msra.mxu0 0.0
    %102 = vmatprep.subr.mxu0 0.0
    %103 = vmatpush1.xpose.msra.mxu0 0.0
    %104 = vmatprep.subr.mxu0 0.0
    %105 = vmatpush1.xpose.msra.mxu0 0.0
    %106 = vmatprep.mubr.f32.mxu0 %v40
    %107 = vmatmul.mubr.f32.gmra.mrb[0].mxu0 %v37
    %v108 = vpop.f32.mrb[0].mxu0
    %v109 = vadd.f32 0.0, %v108
    %v110 = vpop.f32.mrb[0].mxu0
    %111 = vdwg.mxu0
    %v112 = vadd.f32 %v38, %v109
    %vm113 = vcmask 27648
    %114 = vst.msk [vmem:[#allocation5] sm:$0xf] %vm113, %v112
    // Predicated region
    $region14: #{tpu_custom_call.1} parent=1 // pred_check
      %p115 = pneg %p31
    $region15: #{tpu_custom_call.1} parent=1 // pred_check_branch
      %117 = sbr.rel (%p115) target = $region17
    $region16: #{tpu_custom_call.1} parent=1 // pred_region
      %v118 = vld [vmem:[#allocation5] sm:$0xf]
      %v119 = vmul.f32 %v118, 0.00390625
      %120 = vst.msk [vmem:[#allocation5] sm:$0xf] %vm113, %v119
    $region17: #{tpu_custom_call.1} parent=1 // pred_fallthru
      _
    // Predicated region
    $region18: #{tpu_custom_call.1} parent=1 // pred_check
      _
    $region19: #{tpu_custom_call.1} parent=1 // pred_check_branch
      %122 = sbr.rel (0) target = $region21
    $region20: #{tpu_custom_call.1} parent=1 // pred_region
      %s124 = ssub.s32 64, 64
      %125 = vsyncadd [#allocation4], %s124
      %s127 = sshll.u32 [#allocation5], 4
      %s128 = int_to_ptr.vmem [resolvable:$true] %s127
      %130 = dma.vmem_to_hbm [thread:$0]  %s128, 64, %s1, [#allocation4]
    $region21: #{tpu_custom_call.1} parent=1 // pred_fallthru
      _
    // Predicated region
    $region22: #{tpu_custom_call.1} parent=1 // pred_check
      _
    $region23: #{tpu_custom_call.1} parent=1 // pred_check_branch
      %132 = sbr.rel (0) target = $region25
    $region24: #{tpu_custom_call.1} parent=1 // pred_region
      %133 = dma.done [#allocation4], 64
    $region25: #{tpu_custom_call.1} parent=1 // pred_fallthru
      _
    %134 = vsyncpa [#allocation3], 1
    %135 = vsyncpa [#allocation4], 1

</llo_original>
